<compile_context>
chip_gen: v7x
topology: tpu7x:2x2x1
jax: 0.10.0
libtpu: 0.0.40
codegen_flags: <defaults>
</compile_context>

<pallas_src>
import jax
import jax.numpy as jnp
from jax.experimental import pallas as pl
from jax.experimental.pallas import tpu as pltpu


def _mlp_kernel(x_ref, w1_ref, b1_ref, w2_ref, b2_ref, w3_ref, b3_ref, o_ref):
    # Layer 1: Linear(D, 32) + ReLU   (bf16 MXU matmul, f32 accumulate/epilogue)
    h = jnp.dot(x_ref[...], w1_ref[...], preferred_element_type=jnp.float32)
    h = jnp.maximum(h + b1_ref[...], 0.0)
    # Layer 2: Linear(32, 32) + ReLU
    h = jnp.dot(h.astype(jnp.bfloat16), w2_ref[...],
                preferred_element_type=jnp.float32)
    h = jnp.maximum(h + b2_ref[...], 0.0)
    # Output layer: Linear(32, 2), no activation
    d = jnp.dot(h.astype(jnp.bfloat16), w3_ref[...],
                preferred_element_type=jnp.float32)
    o_ref[...] = (d + b3_ref[...]).astype(o_ref.dtype)


def _round_up(n, m):
    return ((n + m - 1) // m) * m


def domain_discriminator_forward(x, params, *, tile_b_max=512):
    """x: (B, D) float array. params: dict of w1,b1,w2,b2,w3,b3 (w stored (in, out))."""
    B, D = x.shape

    # bf16 feeds for the MXU; biases stay f32 for the epilogue.
    x_bf = x.astype(jnp.bfloat16)
    w1 = params["w1"].astype(jnp.bfloat16)
    w2 = params["w2"].astype(jnp.bfloat16)
    w3 = params["w3"].astype(jnp.bfloat16)
    b1 = params["b1"].astype(jnp.float32)
    b2 = params["b2"].astype(jnp.float32)
    b3 = params["b3"].astype(jnp.float32)

    # Batch tile: large, multiple of 16 (bf16 sublane packing). Pad ragged tail.
    tile_b = min(tile_b_max, _round_up(B, 16))
    B_pad = _round_up(B, tile_b)
    if B_pad != B:
        x_bf = jnp.pad(x_bf, ((0, B_pad - B), (0, 0)))
    grid = (B_pad // tile_b,)

    const2d = lambda i: (0, 0)  # resident weights/biases: DMA'd once
    in_specs = [
        pl.BlockSpec((tile_b, D), lambda i: (i, 0)),   # x: tiled over batch
        pl.BlockSpec((D, 32), const2d),                # w1
        pl.BlockSpec((1, 32), const2d),                # b1
        pl.BlockSpec((32, 32), const2d),               # w2
        pl.BlockSpec((1, 32), const2d),                # b2
        pl.BlockSpec((32, 2), const2d),                # w3
        pl.BlockSpec((1, 2), const2d),                 # b3
    ]
    out_spec = pl.BlockSpec((tile_b, 2), lambda i: (i, 0))

    # VMEM budget: double-buffered x/out tiles + (conservatively 2x) weights,
    # with 2x headroom, clamped so it stays safe on v7x's 64 MiB physical VMEM.
    bytes_x = 2 * tile_b * D * 2
    bytes_out = 2 * tile_b * 2 * 4
    bytes_w = 2 * (D * 32 + 32 * 32 + 32 * 2) * 2 + 2 * (32 + 32 + 2) * 4
    vmem_limit = int(max(4 << 20, min(48 << 20, 2 * (bytes_x + bytes_out + bytes_w))))

    flops = 2 * B_pad * (D * 32 + 32 * 32 + 32 * 2)
    bytes_accessed = (B_pad * D * 2                      # x (bf16)
                      + B_pad * 2 * 4                    # output (f32)
                      + (D * 32 + 32 * 32 + 32 * 2) * 2  # weights (bf16)
                      + (32 + 32 + 2) * 4)               # biases (f32)

    out = pl.pallas_call(
        _mlp_kernel,
        out_shape=jax.ShapeDtypeStruct((B_pad, 2), jnp.float32),
        grid=grid,
        in_specs=in_specs,
        out_specs=out_spec,
        compiler_params=pltpu.CompilerParams(
            dimension_semantics=("parallel",),
            vmem_limit_bytes=vmem_limit,
        ),
        cost_estimate=pl.CostEstimate(
            flops=flops, transcendentals=0, bytes_accessed=bytes_accessed),
    )(x_bf, w1, b1, w2, b2, w3, b3)
    return out[:B]


def init_params(key, input_dim_mlp):
    """Matches the PyTorch module: xavier_normal_(gain=1.414), bias = 0.1.
    Weights stored (in, out) so the kernel computes y = x @ W + b."""
    gain = 1.414
    k1, k2, k3 = jax.random.split(key, 3)

    def xavier(k, fan_in, fan_out):
        std = gain * jnp.sqrt(2.0 / (fan_in + fan_out))
        return jax.random.normal(k, (fan_in, fan_out), jnp.float32) * std

    return {
        "w1": xavier(k1, input_dim_mlp, 32),
        "b1": jnp.full((1, 32), 0.1, jnp.float32),
        "w2": xavier(k2, 32, 32),
        "b2": jnp.full((1, 32), 0.1, jnp.float32),
        "w3": xavier(k3, 32, 2),
        "b3": jnp.full((1, 2), 0.1, jnp.float32),
    }


def _reference_forward(x, p):
    h = jnp.maximum(x @ p["w1"] + p["b1"], 0.0)
    h = jnp.maximum(h @ p["w2"] + p["b2"], 0.0)
    return h @ p["w3"] + p["b3"]


if __name__ == "__main__":
    key = jax.random.PRNGKey(0)
    k_x, k_x2, k_p = jax.random.split(key, 3)

    batch, input_dim_mlp = 8, 64
    params = init_params(k_p, input_dim_mlp)

    # Small demo batch (single tile, padded to 16 rows).
    x = jax.random.normal(k_x, (batch, input_dim_mlp), jnp.float32)
    out = jax.block_until_ready(domain_discriminator_forward(x, params))
    ref = _reference_forward(x, params)
    assert out.shape == (batch, 2), out.shape
    # bf16 inputs/weights with f32 accumulation -> loosened tolerance vs f32 ref.
    assert jnp.allclose(out, ref, atol=5e-2, rtol=2e-2), "mismatch vs reference (small batch)"

    # Multi-tile + ragged-tail path (B=300, TILE_B=128 -> grid of 3, padded to 384).
    x2 = jax.random.normal(k_x2, (300, input_dim_mlp), jnp.float32)
    out2 = jax.block_until_ready(
        domain_discriminator_forward(x2, params, tile_b_max=128))
    ref2 = _reference_forward(x2, params)
    assert out2.shape == (300, 2), out2.shape
    assert jnp.allclose(out2, ref2, atol=5e-2, rtol=2e-2), "mismatch vs reference (tiled batch)"

    print("KERNEL_OK")
</pallas_src>

<mosaic_0001>
module attributes {stable_mosaic.version = 11 : i64} {
  func.func @_mlp_kernel(%arg0: i32, %arg1: memref<16x64xbf16, #tpu.memory_space<vmem>>, %arg2: memref<64x32xbf16, #tpu.memory_space<vmem>>, %arg3: memref<1x32xf32, #tpu.memory_space<vmem>>, %arg4: memref<32x32xbf16, #tpu.memory_space<vmem>>, %arg5: memref<1x32xf32, #tpu.memory_space<vmem>>, %arg6: memref<32x2xbf16, #tpu.memory_space<vmem>>, %arg7: memref<1x2xf32, #tpu.memory_space<vmem>>, %arg8: memref<16x2xf32, #tpu.memory_space<vmem>>) attributes {dimension_semantics = [#tpu.dimension_semantics<parallel>], iteration_bounds = array<i64: 1>, scalar_prefetch = 0 : i64, scratch_operands = 0 : i64, tpu.core_type = #tpu.core_type<tc>, window_params = [{transform_indices = @transform_0, window_bounds = array<i64: 16, 64>}, {pipeline_mode = #tpu.pipeline_mode<synchronous>, transform_indices = @transform_1, window_bounds = array<i64: 64, 32>}, {pipeline_mode = #tpu.pipeline_mode<synchronous>, transform_indices = @transform_2, window_bounds = array<i64: 1, 32>}, {pipeline_mode = #tpu.pipeline_mode<synchronous>, transform_indices = @transform_3, window_bounds = array<i64: 32, 32>}, {pipeline_mode = #tpu.pipeline_mode<synchronous>, transform_indices = @transform_4, window_bounds = array<i64: 1, 32>}, {pipeline_mode = #tpu.pipeline_mode<synchronous>, transform_indices = @transform_5, window_bounds = array<i64: 32, 2>}, {pipeline_mode = #tpu.pipeline_mode<synchronous>, transform_indices = @transform_6, window_bounds = array<i64: 1, 2>}, {transform_indices = @transform_7, window_bounds = array<i64: 16, 2>}]} {
    %c0 = arith.constant 0 : index
    %c0_0 = arith.constant 0 : index
    %0 = vector.load %arg1[%c0, %c0_0] : memref<16x64xbf16, #tpu.memory_space<vmem>>, vector<16x64xbf16>
    %c0_1 = arith.constant 0 : index
    %c0_2 = arith.constant 0 : index
    %1 = vector.load %arg2[%c0_1, %c0_2] : memref<64x32xbf16, #tpu.memory_space<vmem>>, vector<64x32xbf16>
    %cst = arith.constant dense<0.000000e+00> : vector<16x32xf32>
    %2 = tpu.matmul %0, %1, %cst {dimension_numbers = #tpu.dot_dimension_numbers<[1], [0], [0], [1], [0, 0, 1, 1], [], []>} : vector<16x64xbf16>, vector<64x32xbf16>, vector<16x32xf32> -> vector<16x32xf32>
    %c0_3 = arith.constant 0 : index
    %c0_4 = arith.constant 0 : index
    %3 = vector.load %arg3[%c0_3, %c0_4] : memref<1x32xf32, #tpu.memory_space<vmem>>, vector<1x32xf32>
    %4 = vector.broadcast %3 : vector<1x32xf32> to vector<16x32xf32>
    %5 = arith.addf %2, %4 : vector<16x32xf32>
    %cst_5 = arith.constant 0.000000e+00 : f32
    %6 = vector.broadcast %cst_5 : f32 to vector<16x32xf32>
    %7 = arith.maximumf %5, %6 : vector<16x32xf32>
    %8 = arith.truncf %7 : vector<16x32xf32> to vector<16x32xbf16>
    %c0_6 = arith.constant 0 : index
    %c0_7 = arith.constant 0 : index
    %9 = vector.load %arg4[%c0_6, %c0_7] : memref<32x32xbf16, #tpu.memory_space<vmem>>, vector<32x32xbf16>
    %cst_8 = arith.constant dense<0.000000e+00> : vector<16x32xf32>
    %10 = tpu.matmul %8, %9, %cst_8 {dimension_numbers = #tpu.dot_dimension_numbers<[1], [0], [0], [1], [0, 0, 1, 1], [], []>} : vector<16x32xbf16>, vector<32x32xbf16>, vector<16x32xf32> -> vector<16x32xf32>
    %c0_9 = arith.constant 0 : index
    %c0_10 = arith.constant 0 : index
    %11 = vector.load %arg5[%c0_9, %c0_10] : memref<1x32xf32, #tpu.memory_space<vmem>>, vector<1x32xf32>
    %12 = vector.broadcast %11 : vector<1x32xf32> to vector<16x32xf32>
    %13 = arith.addf %10, %12 : vector<16x32xf32>
    %cst_11 = arith.constant 0.000000e+00 : f32
    %14 = vector.broadcast %cst_11 : f32 to vector<16x32xf32>
    %15 = arith.maximumf %13, %14 : vector<16x32xf32>
    %16 = arith.truncf %15 : vector<16x32xf32> to vector<16x32xbf16>
    %c0_12 = arith.constant 0 : index
    %c0_13 = arith.constant 0 : index
    %17 = vector.load %arg6[%c0_12, %c0_13] : memref<32x2xbf16, #tpu.memory_space<vmem>>, vector<32x2xbf16>
    %cst_14 = arith.constant dense<0.000000e+00> : vector<16x2xf32>
    %18 = tpu.matmul %16, %17, %cst_14 {dimension_numbers = #tpu.dot_dimension_numbers<[1], [0], [0], [1], [0, 0, 1, 1], [], []>} : vector<16x32xbf16>, vector<32x2xbf16>, vector<16x2xf32> -> vector<16x2xf32>
    %c0_15 = arith.constant 0 : index
    %c0_16 = arith.constant 0 : index
    %19 = vector.load %arg7[%c0_15, %c0_16] : memref<1x2xf32, #tpu.memory_space<vmem>>, vector<1x2xf32>
    %20 = vector.broadcast %19 : vector<1x2xf32> to vector<16x2xf32>
    %21 = arith.addf %18, %20 : vector<16x2xf32>
    %c0_17 = arith.constant 0 : index
    %c0_18 = arith.constant 0 : index
    %22 = vector.load %arg8[%c0_17, %c0_18] : memref<16x2xf32, #tpu.memory_space<vmem>>, vector<16x2xf32>
    tpu.vector_store %arg8[%c0_17, %c0_18], %21 {strides = array<i32>} : memref<16x2xf32, #tpu.memory_space<vmem>>, vector<16x2xf32>,
    return
  }
  func.func @transform_0(%arg0: i32) -> (i32, i32) {
    %c0_i32 = arith.constant 0 : i32
    %c0_i32_0 = arith.constant 0 : i32
    return %arg0, %c0_i32 : i32, i32
  }
  func.func @transform_1(%arg0: i32) -> (i32, i32) {
    %c0_i32 = arith.constant 0 : i32
    %c0_i32_0 = arith.constant 0 : i32
    %c0_i32_1 = arith.constant 0 : i32
    return %c0_i32, %c0_i32_0 : i32, i32
  }
  func.func @transform_2(%arg0: i32) -> (i32, i32) {
    %c0_i32 = arith.constant 0 : i32
    %c0_i32_0 = arith.constant 0 : i32
    %c0_i32_1 = arith.constant 0 : i32
    return %c0_i32, %c0_i32_0 : i32, i32
  }
  func.func @transform_3(%arg0: i32) -> (i32, i32) {
    %c0_i32 = arith.constant 0 : i32
    %c0_i32_0 = arith.constant 0 : i32
    %c0_i32_1 = arith.constant 0 : i32
    return %c0_i32, %c0_i32_0 : i32, i32
  }
  func.func @transform_4(%arg0: i32) -> (i32, i32) {
    %c0_i32 = arith.constant 0 : i32
    %c0_i32_0 = arith.constant 0 : i32
    %c0_i32_1 = arith.constant 0 : i32
    return %c0_i32, %c0_i32_0 : i32, i32
  }
  func.func @transform_5(%arg0: i32) -> (i32, i32) {
    %c0_i32 = arith.constant 0 : i32
    %c0_i32_0 = arith.constant 0 : i32
    %c0_i32_1 = arith.constant 0 : i32
    return %c0_i32, %c0_i32_0 : i32, i32
  }
  func.func @transform_6(%arg0: i32) -> (i32, i32) {
    %c0_i32 = arith.constant 0 : i32
    %c0_i32_0 = arith.constant 0 : i32
    %c0_i32_1 = arith.constant 0 : i32
    return %c0_i32, %c0_i32_0 : i32, i32
  }
  func.func @transform_7(%arg0: i32) -> (i32, i32) {
    %c0_i32 = arith.constant 0 : i32
    %c0_i32_0 = arith.constant 0 : i32
    return %arg0, %c0_i32 : i32, i32
  }
}

</mosaic_0001>

<llo_original>
// kernel: tpu_custom_call.1
$region0: #{tpu_custom_call.1}
  #allocation0 [shape = 'u32[]', space=smem, size = 0x4, offset = 0x4, fixed_abs, tag = 'smem constant byte address 0x4 - core index']
  #allocation1 [shape = 'u32[144,128]{1,0:T(1,128)}', space=vmem, size = 0x12000, scoped, tag = 'internal scratch']
  %s0 = inlined_call_operand.vmem [shape: bf16[16,64], index: 0, kind: input, shape index: {}]
  %s1 = inlined_call_operand.vmem [shape: bf16[64,32], index: 1, kind: input, shape index: {}]
  %s2 = inlined_call_operand.vmem [shape: f32[1,32], index: 2, kind: input, shape index: {}]
  %s3 = inlined_call_operand.vmem [shape: bf16[32,32], index: 3, kind: input, shape index: {}]
  %s4 = inlined_call_operand.vmem [shape: f32[1,32], index: 4, kind: input, shape index: {}]
  %s5 = inlined_call_operand.vmem [shape: bf16[32,2], index: 5, kind: input, shape index: {}]
  %s6 = inlined_call_operand.vmem [shape: f32[1,2], index: 6, kind: input, shape index: {}]
  %s7 = inlined_call_operand.vmem [shape: f32[16,2], index: 7, kind: output, shape index: {}]
  %s8 = sld [smem:[#allocation0]]
  $region38: #{tpu_custom_call.1} parent=0
    _
  %s10 = ssub.s32 1, %s8
  %s11 = scalar_select 0, %s10, %s8
  // Predicated region
  $region2: #{tpu_custom_call.1} parent=0 // pred_check
    _
  $region3: #{tpu_custom_call.1} parent=0 // pred_check_branch
    %13 = sbr.rel (0) target = $region5
  $region4: #{tpu_custom_call.1} parent=0 // pred_region
    _
  $region5: #{tpu_custom_call.1} parent=0 // pred_fallthru
    _
  // Predicated region
  $region6: #{tpu_custom_call.1} parent=0 // pred_check
    _
  $region7: #{tpu_custom_call.1} parent=0 // pred_check_branch
    %15 = sbr.rel (0) target = $region9
  $region8: #{tpu_custom_call.1} parent=0 // pred_region
    _
  $region9: #{tpu_custom_call.1} parent=0 // pred_fallthru
    _
  // Predicated region
  $region10: #{tpu_custom_call.1} parent=0 // pred_check
    _
  $region11: #{tpu_custom_call.1} parent=0 // pred_check_branch
    %17 = sbr.rel (0) target = $region13
  $region12: #{tpu_custom_call.1} parent=0 // pred_region
    _
  $region13: #{tpu_custom_call.1} parent=0 // pred_fallthru
    _
  // Predicated region
  $region14: #{tpu_custom_call.1} parent=0 // pred_check
    _
  $region15: #{tpu_custom_call.1} parent=0 // pred_check_branch
    %19 = sbr.rel (0) target = $region17
  $region16: #{tpu_custom_call.1} parent=0 // pred_region
    _
  $region17: #{tpu_custom_call.1} parent=0 // pred_fallthru
    _
  // Predicated region
  $region18: #{tpu_custom_call.1} parent=0 // pred_check
    _
  $region19: #{tpu_custom_call.1} parent=0 // pred_check_branch
    %21 = sbr.rel (0) target = $region21
  $region20: #{tpu_custom_call.1} parent=0 // pred_region
    _
  $region21: #{tpu_custom_call.1} parent=0 // pred_fallthru
    _
  // Predicated region
  $region22: #{tpu_custom_call.1} parent=0 // pred_check
    _
  $region23: #{tpu_custom_call.1} parent=0 // pred_check_branch
    %23 = sbr.rel (0) target = $region25
  $region24: #{tpu_custom_call.1} parent=0 // pred_region
    _
  $region25: #{tpu_custom_call.1} parent=0 // pred_fallthru
    _
  // Predicated region
  $region26: #{tpu_custom_call.1} parent=0 // pred_check
    _
  $region27: #{tpu_custom_call.1} parent=0 // pred_check_branch
    %25 = sbr.rel (0) target = $region29
  $region28: #{tpu_custom_call.1} parent=0 // pred_region
    _
  $region29: #{tpu_custom_call.1} parent=0 // pred_fallthru
    _
  %v27 = vld [vmem:[%s0] sm:$0xf]
  %v28 = vld [vmem:[%s0 + $0x4] sm:$0xf]
  %v29 = vld [vmem:[%s1] sm:$0xf]
  %v30 = vld [vmem:[%s1 + $0x4] sm:$0xf]
  %v31 = vld [vmem:[%s1 + $0x8] sm:$0xf]
  %v32 = vld [vmem:[%s1 + $0xc] sm:$0xf]
  %v33 = vld [vmem:[%s1 + $0x10] sm:$0xf]
  %v34 = vld [vmem:[%s1 + $0x14] sm:$0xf]
  %v35 = vld [vmem:[%s1 + $0x18] sm:$0xf]
  %v36 = vld [vmem:[%s1 + $0x1c] sm:$0xf]
  %v37 = vld [vmem:[%s2] sm:$0x1]
  %v39 = vlaneseq
  %v40 = vshrl.u32 %v39, 7
  %v41 = vsub.s32 0, %v40
  %v42 = vrot.slane %v37, %v41
  %v46 = vunpack.c.l.b16 %v27
  %v47 = vunpack.c.l.b16 %v28
  %v48 = vpack.c.b16 %v47, %v46
  %v57 = vunpack.c.l.b16 %v29
  %v58 = vunpack.c.l.b16 %v30
  %v59 = vunpack.c.l.b16 %v31
  %v60 = vunpack.c.l.b16 %v32
  %v61 = vunpack.c.l.b16 %v33
  %v62 = vunpack.c.l.b16 %v34
  %v63 = vunpack.c.l.b16 %v35
  %v64 = vunpack.c.l.b16 %v36
  %v65 = vpack.c.b16 %v58, %v57
  %v66 = vpack.c.b16 %v60, %v59
  %v67 = vpack.c.b16 %v62, %v61
  %v68 = vpack.c.b16 %v64, %v63
  %vm73 = vcmask 523264
  %v75 = vsel %vm73, %v48, 0
  %77 = vmatprep.subr.bf16.mxu0 0
  %78 = vmatpush1.bf16.msra.mxu0 %v65
  %79 = vmatprep.subr.bf16.mxu0 0
  %80 = vmatpush1.bf16.msra.mxu0 %v66
  %81 = vmatprep.subr.bf16.mxu0 0
  %82 = vmatpush1.bf16.msra.mxu0 %v67
  %83 = vmatprep.subr.bf16.mxu0 0
  %84 = vmatpush1.bf16.msra.mxu0 %v68
  %85 = vmatprep.subr.bf16.mxu0 0
  %86 = vmatpush1.bf16.msra.mxu0 0
  %87 = vmatprep.subr.bf16.mxu0 0
  %88 = vmatpush1.bf16.msra.mxu0 0
  %89 = vmatprep.subr.bf16.mxu0 0
  %90 = vmatpush1.bf16.msra.mxu0 0
  %91 = vmatprep.subr.bf16.mxu0 0
  %92 = vmatpush1.bf16.msra.mxu0 0
  %93 = vmatprep.subr.bf16.mxu0 0
  %94 = vmatpush1.bf16.msra.mxu0 0
  %95 = vmatprep.subr.bf16.mxu0 0
  %96 = vmatpush1.bf16.msra.mxu0 0
  %97 = vmatprep.subr.bf16.mxu0 0
  %98 = vmatpush1.bf16.msra.mxu0 0
  %99 = vmatprep.subr.bf16.mxu0 0
  %100 = vmatpush1.bf16.msra.mxu0 0
  %101 = vmatprep.subr.bf16.mxu0 0
  %102 = vmatpush1.bf16.msra.mxu0 0
  %103 = vmatprep.subr.bf16.mxu0 0
  %104 = vmatpush1.bf16.msra.mxu0 0
  %105 = vmatprep.subr.bf16.mxu0 0
  %106 = vmatpush1.bf16.msra.mxu0 0
  %107 = vmatprep.subr.bf16.mxu0 0
  %108 = vmatpush1.bf16.msra.mxu0 0
  %109 = vmatprep.mubr.bf16.mxu0 0
  %110 = vmatmul.mubr.bf16.gmra.mrb[0].mxu0 %v75
  %v111 = vpop.f32.mrb[0].mxu0
  %v112 = vadd.f32 %v42, %v111
  %v113 = vpop.f32.mrb[0].mxu0
  %v114 = vpop.f32.mrb[0].mxu0
  %v115 = vadd.f32 %v42, %v114
  %v116 = vpop.f32.mrb[0].mxu0
  %117 = vdwg.mxu0
  %v118 = vmax.f32 %v112, 0.0
  %v119 = vmax.f32 %v115, 0.0
  %v120 = vpack.c.bf16 %v119, %v118
  %v121 = vld [vmem:[%s3] sm:$0xf]
  %v122 = vld [vmem:[%s3 + $0x4] sm:$0xf]
  %v123 = vld [vmem:[%s3 + $0x8] sm:$0xf]
  %v124 = vld [vmem:[%s3 + $0xc] sm:$0xf]
  %v125 = vld [vmem:[%s4] sm:$0x1]
  %v127 = vlaneseq
  %v128 = vshrl.u32 %v127, 7
  %v129 = vsub.s32 0, %v128
  %v130 = vrot.slane %v125, %v129
  %v136 = vunpack.c.l.b16 %v121
  %v137 = vunpack.c.l.b16 %v122
  %v138 = vunpack.c.l.b16 %v123
  %v139 = vunpack.c.l.b16 %v124
  %v140 = vpack.c.b16 %v137, %v136
  %v141 = vpack.c.b16 %v139, %v138
  %vm144 = vcmask 261120
  %v146 = vsel %vm144, %v120, 0
  %148 = vmatprep.subr.bf16.mxu0 0
  %149 = vmatpush1.bf16.msra.mxu0 %v140
  %150 = vmatprep.subr.bf16.mxu0 0
  %151 = vmatpush1.bf16.msra.mxu0 %v141
  %152 = vmatprep.subr.bf16.mxu0 0
  %153 = vmatpush1.bf16.msra.mxu0 0
  %154 = vmatprep.subr.bf16.mxu0 0
  %155 = vmatpush1.bf16.msra.mxu0 0
  %156 = vmatprep.subr.bf16.mxu0 0
  %157 = vmatpush1.bf16.msra.mxu0 0
  %158 = vmatprep.subr.bf16.mxu0 0
  %159 = vmatpush1.bf16.msra.mxu0 0
  %160 = vmatprep.subr.bf16.mxu0 0
  %161 = vmatpush1.bf16.msra.mxu0 0
  %162 = vmatprep.subr.bf16.mxu0 0
  %163 = vmatpush1.bf16.msra.mxu0 0
  %164 = vmatprep.subr.bf16.mxu0 0
  %165 = vmatpush1.bf16.msra.mxu0 0
  %166 = vmatprep.subr.bf16.mxu0 0
  %167 = vmatpush1.bf16.msra.mxu0 0
  %168 = vmatprep.subr.bf16.mxu0 0
  %169 = vmatpush1.bf16.msra.mxu0 0
  %170 = vmatprep.subr.bf16.mxu0 0
  %171 = vmatpush1.bf16.msra.mxu0 0
  %172 = vmatprep.subr.bf16.mxu0 0
  %173 = vmatpush1.bf16.msra.mxu0 0
  %174 = vmatprep.subr.bf16.mxu0 0
  %175 = vmatpush1.bf16.msra.mxu0 0
  %176 = vmatprep.subr.bf16.mxu0 0
  %177 = vmatpush1.bf16.msra.mxu0 0
  %178 = vmatprep.subr.bf16.mxu0 0
  %179 = vmatpush1.bf16.msra.mxu0 0
  %180 = vmatprep.mubr.bf16.mxu0 0
  %181 = vmatmul.mubr.bf16.gmra.mrb[0].mxu0 %v146
  %v182 = vpop.f32.mrb[0].mxu0
  %v183 = vadd.f32 %v130, %v182
  %v184 = vpop.f32.mrb[0].mxu0
  %v185 = vpop.f32.mrb[0].mxu0
  %v186 = vadd.f32 %v130, %v185
  %v187 = vpop.f32.mrb[0].mxu0
  %188 = vdwg.mxu0
  %v189 = vmax.f32 %v183, 0.0
  %v190 = vmax.f32 %v186, 0.0
  %v191 = vpack.c.bf16 %v190, %v189
  %v192 = vld [vmem:[%s5] sm:$0xf]
  %v193 = vld [vmem:[%s5 + $0x4] sm:$0xf]
  %v194 = vld [vmem:[%s5 + $0x8] sm:$0xf]
  %v195 = vld [vmem:[%s5 + $0xc] sm:$0xf]
  %v196 = vld [vmem:[%s6] sm:$0x1]
  %v198 = vlaneseq
  %v199 = vshrl.u32 %v198, 7
  %v200 = vsub.s32 0, %v199
  %v201 = vrot.slane %v196, %v200
  %v207 = vunpack.c.l.b16 %v192
  %v208 = vunpack.c.l.b16 %v193
  %v209 = vunpack.c.l.b16 %v194
  %v210 = vunpack.c.l.b16 %v195
  %v211 = vpack.c.b16 %v208, %v207
  %v212 = vpack.c.b16 %v210, %v209
  %v216 = vsel %vm144, %v191, 0
  %218 = vmatprep.subr.bf16.mxu0 0
  %219 = vmatpush1.bf16.msra.mxu0 %v211
  %220 = vmatprep.subr.bf16.mxu0 0
  %221 = vmatpush1.bf16.msra.mxu0 %v212
  %222 = vmatprep.subr.bf16.mxu0 0
  %223 = vmatpush1.bf16.msra.mxu0 0
  %224 = vmatprep.subr.bf16.mxu0 0
  %225 = vmatpush1.bf16.msra.mxu0 0
  %226 = vmatprep.subr.bf16.mxu0 0
  %227 = vmatpush1.bf16.msra.mxu0 0
  %228 = vmatprep.subr.bf16.mxu0 0
  %229 = vmatpush1.bf16.msra.mxu0 0
  %230 = vmatprep.subr.bf16.mxu0 0
  %231 = vmatpush1.bf16.msra.mxu0 0
  %232 = vmatprep.subr.bf16.mxu0 0
  %233 = vmatpush1.bf16.msra.mxu0 0
  %234 = vmatprep.subr.bf16.mxu0 0
  %235 = vmatpush1.bf16.msra.mxu0 0
  %236 = vmatprep.subr.bf16.mxu0 0
  %237 = vmatpush1.bf16.msra.mxu0 0
  %238 = vmatprep.subr.bf16.mxu0 0
  %239 = vmatpush1.bf16.msra.mxu0 0
  %240 = vmatprep.subr.bf16.mxu0 0
  %241 = vmatpush1.bf16.msra.mxu0 0
  %242 = vmatprep.subr.bf16.mxu0 0
  %243 = vmatpush1.bf16.msra.mxu0 0
  %244 = vmatprep.subr.bf16.mxu0 0
  %245 = vmatpush1.bf16.msra.mxu0 0
  %246 = vmatprep.subr.bf16.mxu0 0
  %247 = vmatpush1.bf16.msra.mxu0 0
  %248 = vmatprep.subr.bf16.mxu0 0
  %249 = vmatpush1.bf16.msra.mxu0 0
  %250 = vmatprep.mubr.bf16.mxu0 0
  %251 = vmatmul.mubr.bf16.gmra.mrb[0].mxu0 %v216
  %v252 = vpop.f32.mrb[0].mxu0
  %v253 = vadd.f32 %v201, %v252
  %v254 = vpop.f32.mrb[0].mxu0
  %v255 = vpop.f32.mrb[0].mxu0
  %v256 = vadd.f32 %v201, %v255
  %v257 = vpop.f32.mrb[0].mxu0
  %258 = vdwg.mxu0
  %vm259 = vcmask 15360
  %260 = vst.msk [vmem:[%s7] sm:$0xff] %vm259, %v253
  %261 = vst.msk [vmem:[%s7 + $0x8] sm:$0xff] %vm259, %v256
  // Predicated region
  $region30: #{tpu_custom_call.1} parent=0 // pred_check
    _
  $region31: #{tpu_custom_call.1} parent=0 // pred_check_branch
    %263 = sbr.rel (0) target = $region33
  $region32: #{tpu_custom_call.1} parent=0 // pred_region
    _
  $region33: #{tpu_custom_call.1} parent=0 // pred_fallthru
    _
  // Predicated region
  $region34: #{tpu_custom_call.1} parent=0 // pred_check
    _
  $region35: #{tpu_custom_call.1} parent=0 // pred_check_branch
    %265 = sbr.rel (0) target = $region37
  $region36: #{tpu_custom_call.1} parent=0 // pred_region
    _
  $region37: #{tpu_custom_call.1} parent=0 // pred_fallthru
    _

</llo_original>
